<compile_context>
chip_gen: v7x
topology: tpu7x:2x2x1
jax: 0.10.0
libtpu: 0.0.40
codegen_flags: <defaults>
</compile_context>

<pallas_src>
import functools

import jax
import jax.numpy as jnp
from jax.experimental import pallas as pl
from jax.experimental.pallas import tpu as pltpu


def _round_up(a, m):
    return ((a + m - 1) // m) * m


_NEG_BIG = -1e30  # softmax mask value (avoids inf arithmetic in-kernel)


def _han_kernel(G, S, Sp, T, Tp, Dp,
                x_ref, ww_ref, bw_ref, cw_ref, ws_ref, bs_ref, cs_ref,
                out_ref):
    """Fused word-level + sentence-level HAN attention for G batches.

    x_ref  : (G*Sp*Tp, Dp) bf16, rows ordered (b, s, t)
    ww_ref : (Dp, Dp) bf16      ws_ref : (Dp, Dp) f32
    bw/bs  : (1, Dp) f32        cw/cs  : (1, Dp) f32
    out_ref: (G, Dp) f32
    """
    fx = x_ref[...]                       # bf16 slab (MXU operand)
    f = fx.astype(jnp.float32)            # f32 copy for the weighted sums

    # ---- word level --------------------------------------------------------
    # One dense bf16 matmul for every (b, s, t) row (f32 accumulate), one tanh
    # EUP push for the whole slab.
    u = jnp.tanh(
        jnp.dot(fx, ww_ref[...], preferred_element_type=jnp.float32) + bw_ref[...]
    )                                                            # (G*Sp*Tp, Dp) f32
    # Scores via VPU multiply + native lane reduce (no 1-lane MXU result).
    s_col = jnp.tanh(jnp.sum(u * cw_ref[...], axis=-1, keepdims=True))  # (G*Sp*Tp, 1)

    # Softmax over the (padded) word axis Tp, independently per (b, s).
    # Tp is a multiple of 8, so the leading-dim split is a zero-cost view and
    # the axis-1 reduces are native sublane reductions.
    scores = s_col.reshape(G * Sp, Tp, 1)
    wmask = jax.lax.broadcasted_iota(jnp.int32, (1, Tp, 1), 1) < T
    scores = jnp.where(wmask, scores, _NEG_BIG)
    m = jnp.max(scores, axis=1, keepdims=True)
    e = jnp.exp(scores - m)
    alpha = e * pl.reciprocal(jnp.sum(e, axis=1, keepdims=True), approx=True)

    # Attention-weighted sum over words: one VPU multiply + one sublane reduce.
    f3 = f.reshape(G * Sp, Tp, Dp)
    sent = jnp.sum(f3 * alpha, axis=1)                           # (G*Sp, Dp) f32

    # ---- sentence level (document attention), data stays resident in VMEM ---
    u2 = jnp.tanh(
        jnp.dot(sent, ws_ref[...], preferred_element_type=jnp.float32) + bs_ref[...]
    )                                                            # (G*Sp, Dp) f32
    s2_col = jnp.tanh(jnp.sum(u2 * cs_ref[...], axis=-1, keepdims=True))  # (G*Sp, 1)

    scores2 = s2_col.reshape(G, Sp, 1)
    smask = jax.lax.broadcasted_iota(jnp.int32, (1, Sp, 1), 1) < S
    scores2 = jnp.where(smask, scores2, _NEG_BIG)
    m2 = jnp.max(scores2, axis=1, keepdims=True)
    e2 = jnp.exp(scores2 - m2)
    alpha2 = e2 * pl.reciprocal(jnp.sum(e2, axis=1, keepdims=True), approx=True)

    doc = jnp.sum(sent.reshape(G, Sp, Dp) * alpha2, axis=1)      # (G, Dp)
    out_ref[...] = doc.astype(out_ref.dtype)


def hier_att_net_forward(x, params):
    """x: (batch, num_sent, num_word, feat) -> (batch, feat)."""
    B, S, T, D = x.shape
    Dp = _round_up(D, 128)   # lane-dense feature dim
    Tp = _round_up(T, 8)     # sublane-aligned word axis (zero-cost reshapes)
    Sp = _round_up(S, 8)     # sublane-aligned sentence axis

    rows_per_batch = Sp * Tp

    # Group G batches per grid step: big enough to amortize the ~0.35us
    # per-step overhead (>=512 rows where possible), small enough that the
    # double-buffered bf16 x block plus its f32 intermediates stay well inside
    # v7x's 64 MiB VMEM / v5e's 16 MiB scoped default (so no vmem_limit_bytes
    # override is needed).
    # TODO(synk): for very large S*T per batch also grid over the sentence
    # axis and raise vmem_limit_bytes on v5e/v6e to use their larger VMEM.
    bytes_per_batch = rows_per_batch * Dp * 2            # bf16 x rows
    g_cap = max(1, (4 * 1024 * 1024) // bytes_per_batch)
    g_want = max(1, -(-512 // rows_per_batch))           # ceil(512 / rows)
    G = min(B, g_cap, g_want)
    if G >= B:
        G, Bp = B, B                                     # single grid step
    else:
        G = max(8, (G // 8) * 8)                         # out block 2nd-minor dim: x8
        Bp = _round_up(B, G)
    grid = (Bp // G,)

    # Zero-pad in the wrapper (free in XLA).  Padded feature columns of the
    # weights/bias/context are zero, so they contribute nothing to scores or
    # weighted sums; padded words/sentences are masked in-kernel.
    x_p = jnp.pad(x, ((0, Bp - B), (0, Sp - S), (0, Tp - T), (0, Dp - D)))
    x_flat = x_p.reshape(Bp * Sp * Tp, Dp).astype(jnp.bfloat16)

    def pad2(a, r, c):
        return jnp.pad(a, ((0, r - a.shape[0]), (0, c - a.shape[1])))

    ww = pad2(params["word_weight"], Dp, Dp).astype(jnp.bfloat16)  # MXU operand
    bw = pad2(params["word_bias"], 1, Dp).astype(jnp.float32)
    cw = pad2(params["word_context"].reshape(1, D), 1, Dp).astype(jnp.float32)
    ws = pad2(params["sent_weight"], Dp, Dp).astype(jnp.float32)   # VMEM-resident, f32
    bs = pad2(params["sent_bias"], 1, Dp).astype(jnp.float32)
    cs = pad2(params["sent_context"].reshape(1, D), 1, Dp).astype(jnp.float32)

    kernel = functools.partial(_han_kernel, G, S, Sp, T, Tp, Dp)
    step_rows = G * Sp * Tp
    const = lambda b: (0, 0)

    out = pl.pallas_call(
        kernel,
        out_shape=jax.ShapeDtypeStruct((Bp, Dp), jnp.float32),
        grid=grid,
        in_specs=[
            pl.BlockSpec((step_rows, Dp), lambda b: (b, 0)),   # x (pipelined over batch)
            pl.BlockSpec((Dp, Dp), const),                     # word_weight (resident)
            pl.BlockSpec((1, Dp), const),                      # word_bias
            pl.BlockSpec((1, Dp), const),                      # word_context
            pl.BlockSpec((Dp, Dp), const),                     # sent_weight
            pl.BlockSpec((1, Dp), const),                      # sent_bias
            pl.BlockSpec((1, Dp), const),                      # sent_context
        ],
        out_specs=pl.BlockSpec((G, Dp), lambda b: (b, 0)),
        compiler_params=pltpu.CompilerParams(
            dimension_semantics=("parallel",)),                # 2 TCs on v7x split batch
    )(x_flat, ww, bw, cw, ws, bs, cs)

    return out[:B, :D]


def _reference(x, p):
    """Pure-JAX reference with the same semantics (and same bf16 rounding of
    the word-level MXU operands) for a correctness check."""
    xw = x.astype(jnp.bfloat16).astype(jnp.float32)
    ww = p["word_weight"].astype(jnp.bfloat16).astype(jnp.float32)

    u = jnp.tanh(xw @ ww + p["word_bias"])
    s = jnp.tanh(u @ p["word_context"])                 # (B, S, T, 1)
    a = jax.nn.softmax(s, axis=2)
    sent = jnp.sum(xw * a, axis=2)                      # (B, S, D)

    u2 = jnp.tanh(sent @ p["sent_weight"] + p["sent_bias"])
    s2 = jnp.tanh(u2 @ p["sent_context"])               # (B, S, 1)
    a2 = jax.nn.softmax(s2, axis=1)
    return jnp.sum(sent * a2, axis=1)                   # (B, D)


def init_params(key, word_hidden_size, sent_hidden_size):
    assert word_hidden_size == sent_hidden_size, (
        "truncated reference (no GRU) requires word/sent feature widths to match"
    )
    Dw = 2 * word_hidden_size
    Ds = 2 * sent_hidden_size
    ks = jax.random.split(key, 6)
    std = 0.05
    # TODO(synk): the reference never initializes word_bias / sent_bias
    # (uninitialized torch.Tensor); we initialize them deterministically here.
    return {
        "word_weight": std * jax.random.normal(ks[0], (Dw, Dw), jnp.float32),
        "word_bias": std * jax.random.normal(ks[1], (1, Dw), jnp.float32),
        "word_context": std * jax.random.normal(ks[2], (Dw, 1), jnp.float32),
        "sent_weight": std * jax.random.normal(ks[3], (Ds, Ds), jnp.float32),
        "sent_bias": std * jax.random.normal(ks[4], (1, Ds), jnp.float32),
        "sent_context": std * jax.random.normal(ks[5], (Ds, 1), jnp.float32),
    }


if __name__ == "__main__":
    word_hidden_size = 16
    sent_hidden_size = 16
    batch = 2
    num_sent = 4      # pads to 8 -> exercises the sentence-level mask
    num_word = 6      # pads to 8 -> exercises the word-level mask
    feat = 2 * word_hidden_size  # 32, pads to 128 lanes

    key = jax.random.PRNGKey(0)
    k_params, k_x = jax.random.split(key)
    params = init_params(k_params, word_hidden_size, sent_hidden_size)
    x = jax.random.normal(k_x, (batch, num_sent, num_word, feat), jnp.float32)

    out = jax.block_until_ready(hier_att_net_forward(x, params))
    assert out.shape == (batch, feat), out.shape

    ref = jax.block_until_ready(_reference(x, params))
    assert jnp.allclose(out, ref, atol=1e-2, rtol=1e-2), (
        float(jnp.max(jnp.abs(out - ref)))
    )

    print("KERNEL_OK")
</pallas_src>

<mosaic_0001>
module attributes {stable_mosaic.version = 11 : i64} {
  func.func @_han_kernel(%arg0: i32, %arg1: memref<128x128xbf16, #tpu.memory_space<vmem>>, %arg2: memref<128x128xbf16, #tpu.memory_space<vmem>>, %arg3: memref<1x128xf32, #tpu.memory_space<vmem>>, %arg4: memref<1x128xf32, #tpu.memory_space<vmem>>, %arg5: memref<128x128xf32, #tpu.memory_space<vmem>>, %arg6: memref<1x128xf32, #tpu.memory_space<vmem>>, %arg7: memref<1x128xf32, #tpu.memory_space<vmem>>, %arg8: memref<2x128xf32, #tpu.memory_space<vmem>>) attributes {dimension_semantics = [#tpu.dimension_semantics<parallel>], iteration_bounds = array<i64: 1>, scalar_prefetch = 0 : i64, scratch_operands = 0 : i64, tpu.core_type = #tpu.core_type<tc>, window_params = [{transform_indices = @transform_0, window_bounds = array<i64: 128, 128>}, {pipeline_mode = #tpu.pipeline_mode<synchronous>, transform_indices = @transform_1, window_bounds = array<i64: 128, 128>}, {pipeline_mode = #tpu.pipeline_mode<synchronous>, transform_indices = @transform_2, window_bounds = array<i64: 1, 128>}, {pipeline_mode = #tpu.pipeline_mode<synchronous>, transform_indices = @transform_3, window_bounds = array<i64: 1, 128>}, {pipeline_mode = #tpu.pipeline_mode<synchronous>, transform_indices = @transform_4, window_bounds = array<i64: 128, 128>}, {pipeline_mode = #tpu.pipeline_mode<synchronous>, transform_indices = @transform_5, window_bounds = array<i64: 1, 128>}, {pipeline_mode = #tpu.pipeline_mode<synchronous>, transform_indices = @transform_6, window_bounds = array<i64: 1, 128>}, {transform_indices = @transform_7, window_bounds = array<i64: 2, 128>}]} {
    %c0 = arith.constant 0 : index
    %c0_0 = arith.constant 0 : index
    %0 = vector.load %arg1[%c0, %c0_0] : memref<128x128xbf16, #tpu.memory_space<vmem>>, vector<128x128xbf16>
    %1 = arith.extf %0 : vector<128x128xbf16> to vector<128x128xf32>
    %c0_1 = arith.constant 0 : index
    %c0_2 = arith.constant 0 : index
    %2 = vector.load %arg2[%c0_1, %c0_2] : memref<128x128xbf16, #tpu.memory_space<vmem>>, vector<128x128xbf16>
    %cst = arith.constant dense<0.000000e+00> : vector<128x128xf32>
    %3 = tpu.matmul %0, %2, %cst {dimension_numbers = #tpu.dot_dimension_numbers<[1], [0], [0], [1], [0, 0, 1, 1], [], []>} : vector<128x128xbf16>, vector<128x128xbf16>, vector<128x128xf32> -> vector<128x128xf32>
    %c0_3 = arith.constant 0 : index
    %c0_4 = arith.constant 0 : index
    %4 = vector.load %arg3[%c0_3, %c0_4] : memref<1x128xf32, #tpu.memory_space<vmem>>, vector<1x128xf32>
    %5 = vector.broadcast %4 : vector<1x128xf32> to vector<128x128xf32>
    %6 = arith.addf %3, %5 : vector<128x128xf32>
    %7 = math.tanh %6 : vector<128x128xf32>
    %c0_5 = arith.constant 0 : index
    %c0_6 = arith.constant 0 : index
    %8 = vector.load %arg4[%c0_5, %c0_6] : memref<1x128xf32, #tpu.memory_space<vmem>>, vector<1x128xf32>
    %9 = vector.broadcast %8 : vector<1x128xf32> to vector<128x128xf32>
    %10 = arith.mulf %7, %9 : vector<128x128xf32>
    %cst_7 = arith.constant dense<0.000000e+00> : vector<128xf32>
    %11 = vector.multi_reduction <add>, %10, %cst_7 [1] : vector<128x128xf32> to vector<128xf32>
    %12 = vector.shape_cast %11 : vector<128xf32> to vector<128x1xf32>
    %13 = math.tanh %12 : vector<128x1xf32>
    %14 = vector.shape_cast %13 : vector<128x1xf32> to vector<16x8x1xf32>
    %15 = tpu.iota {dimensions = array<i32: 1>} : vector<1x8x1xi32>
    %c6_i32 = arith.constant 6 : i32
    %16 = vector.broadcast %c6_i32 : i32 to vector<1x8x1xi32>
    %17 = arith.cmpi slt, %15, %16 : vector<1x8x1xi32>
    %cst_8 = arith.constant -1.000000e+30 : f32
    %18 = vector.shape_cast %17 : vector<1x8x1xi1> to vector<1x8x1xi1>
    %19 = vector.broadcast %18 : vector<1x8x1xi1> to vector<16x8x1xi1>
    %20 = vector.broadcast %cst_8 : f32 to vector<16x8x1xf32>
    %21 = arith.select %19, %14, %20 : vector<16x8x1xi1>, vector<16x8x1xf32>
    %cst_9 = arith.constant dense<0xFF800000> : vector<16x1xf32>
    %22 = vector.multi_reduction <maximumf>, %21, %cst_9 [1] : vector<16x8x1xf32> to vector<16x1xf32>
    %23 = vector.shape_cast %22 : vector<16x1xf32> to vector<16x1x1xf32>
    %24 = vector.broadcast %23 : vector<16x1x1xf32> to vector<16x8x1xf32>
    %25 = arith.subf %21, %24 : vector<16x8x1xf32>
    %26 = math.exp %25 : vector<16x8x1xf32>
    %cst_10 = arith.constant dense<0.000000e+00> : vector<16x1xf32>
    %27 = vector.multi_reduction <add>, %26, %cst_10 [1] : vector<16x8x1xf32> to vector<16x1xf32>
    %28 = vector.shape_cast %27 : vector<16x1xf32> to vector<16x1x1xf32>
    %29 = tpu.reciprocal %28 {approx = true} : vector<16x1x1xf32> -> vector<16x1x1xf32>
    %30 = vector.broadcast %29 : vector<16x1x1xf32> to vector<16x8x1xf32>
    %31 = arith.mulf %26, %30 : vector<16x8x1xf32>
    %32 = vector.shape_cast %1 : vector<128x128xf32> to vector<16x8x128xf32>
    %33 = vector.broadcast %31 : vector<16x8x1xf32> to vector<16x8x128xf32>
    %34 = arith.mulf %32, %33 : vector<16x8x128xf32>
    %cst_11 = arith.constant dense<0.000000e+00> : vector<16x128xf32>
    %35 = vector.multi_reduction <add>, %34, %cst_11 [1] : vector<16x8x128xf32> to vector<16x128xf32>
    %c0_12 = arith.constant 0 : index
    %c0_13 = arith.constant 0 : index
    %36 = vector.load %arg5[%c0_12, %c0_13] : memref<128x128xf32, #tpu.memory_space<vmem>>, vector<128x128xf32>
    %cst_14 = arith.constant dense<0.000000e+00> : vector<16x128xf32>
    %37 = tpu.matmul %35, %36, %cst_14 {dimension_numbers = #tpu.dot_dimension_numbers<[1], [0], [0], [1], [0, 0, 1, 1], [], []>} : vector<16x128xf32>, vector<128x128xf32>, vector<16x128xf32> -> vector<16x128xf32>
    %c0_15 = arith.constant 0 : index
    %c0_16 = arith.constant 0 : index
    %38 = vector.load %arg6[%c0_15, %c0_16] : memref<1x128xf32, #tpu.memory_space<vmem>>, vector<1x128xf32>
    %39 = vector.broadcast %38 : vector<1x128xf32> to vector<16x128xf32>
    %40 = arith.addf %37, %39 : vector<16x128xf32>
    %41 = math.tanh %40 : vector<16x128xf32>
    %c0_17 = arith.constant 0 : index
    %c0_18 = arith.constant 0 : index
    %42 = vector.load %arg7[%c0_17, %c0_18] : memref<1x128xf32, #tpu.memory_space<vmem>>, vector<1x128xf32>
    %43 = vector.broadcast %42 : vector<1x128xf32> to vector<16x128xf32>
    %44 = arith.mulf %41, %43 : vector<16x128xf32>
    %cst_19 = arith.constant dense<0.000000e+00> : vector<16xf32>
    %45 = vector.multi_reduction <add>, %44, %cst_19 [1] : vector<16x128xf32> to vector<16xf32>
    %46 = vector.shape_cast %45 : vector<16xf32> to vector<16x1xf32>
    %47 = math.tanh %46 : vector<16x1xf32>
    %48 = vector.shape_cast %47 : vector<16x1xf32> to vector<2x8x1xf32>
    %49 = tpu.iota {dimensions = array<i32: 1>} : vector<1x8x1xi32>
    %c4_i32 = arith.constant 4 : i32
    %50 = vector.broadcast %c4_i32 : i32 to vector<1x8x1xi32>
    %51 = arith.cmpi slt, %49, %50 : vector<1x8x1xi32>
    %cst_20 = arith.constant -1.000000e+30 : f32
    %52 = vector.shape_cast %51 : vector<1x8x1xi1> to vector<1x8x1xi1>
    %53 = vector.broadcast %52 : vector<1x8x1xi1> to vector<2x8x1xi1>
    %54 = vector.broadcast %cst_20 : f32 to vector<2x8x1xf32>
    %55 = arith.select %53, %48, %54 : vector<2x8x1xi1>, vector<2x8x1xf32>
    %cst_21 = arith.constant dense<0xFF800000> : vector<2x1xf32>
    %56 = vector.multi_reduction <maximumf>, %55, %cst_21 [1] : vector<2x8x1xf32> to vector<2x1xf32>
    %57 = vector.shape_cast %56 : vector<2x1xf32> to vector<2x1x1xf32>
    %58 = vector.broadcast %57 : vector<2x1x1xf32> to vector<2x8x1xf32>
    %59 = arith.subf %55, %58 : vector<2x8x1xf32>
    %60 = math.exp %59 : vector<2x8x1xf32>
    %cst_22 = arith.constant dense<0.000000e+00> : vector<2x1xf32>
    %61 = vector.multi_reduction <add>, %60, %cst_22 [1] : vector<2x8x1xf32> to vector<2x1xf32>
    %62 = vector.shape_cast %61 : vector<2x1xf32> to vector<2x1x1xf32>
    %63 = tpu.reciprocal %62 {approx = true} : vector<2x1x1xf32> -> vector<2x1x1xf32>
    %64 = vector.broadcast %63 : vector<2x1x1xf32> to vector<2x8x1xf32>
    %65 = arith.mulf %60, %64 : vector<2x8x1xf32>
    %66 = vector.shape_cast %35 : vector<16x128xf32> to vector<2x8x128xf32>
    %67 = vector.broadcast %65 : vector<2x8x1xf32> to vector<2x8x128xf32>
    %68 = arith.mulf %66, %67 : vector<2x8x128xf32>
    %cst_23 = arith.constant dense<0.000000e+00> : vector<2x128xf32>
    %69 = vector.multi_reduction <add>, %68, %cst_23 [1] : vector<2x8x128xf32> to vector<2x128xf32>
    %c0_24 = arith.constant 0 : index
    %c0_25 = arith.constant 0 : index
    %70 = vector.load %arg8[%c0_24, %c0_25] : memref<2x128xf32, #tpu.memory_space<vmem>>, vector<2x128xf32>
    tpu.vector_store %arg8[%c0_24, %c0_25], %69 {strides = array<i32>} : memref<2x128xf32, #tpu.memory_space<vmem>>, vector<2x128xf32>,
    return
  }
  func.func @transform_0(%arg0: i32) -> (i32, i32) {
    %c0_i32 = arith.constant 0 : i32
    %c0_i32_0 = arith.constant 0 : i32
    return %arg0, %c0_i32 : i32, i32
  }
  func.func @transform_1(%arg0: i32) -> (i32, i32) {
    %c0_i32 = arith.constant 0 : i32
    %c0_i32_0 = arith.constant 0 : i32
    %c0_i32_1 = arith.constant 0 : i32
    return %c0_i32, %c0_i32_0 : i32, i32
  }
  func.func @transform_2(%arg0: i32) -> (i32, i32) {
    %c0_i32 = arith.constant 0 : i32
    %c0_i32_0 = arith.constant 0 : i32
    %c0_i32_1 = arith.constant 0 : i32
    return %c0_i32, %c0_i32_0 : i32, i32
  }
  func.func @transform_3(%arg0: i32) -> (i32, i32) {
    %c0_i32 = arith.constant 0 : i32
    %c0_i32_0 = arith.constant 0 : i32
    %c0_i32_1 = arith.constant 0 : i32
    return %c0_i32, %c0_i32_0 : i32, i32
  }
  func.func @transform_4(%arg0: i32) -> (i32, i32) {
    %c0_i32 = arith.constant 0 : i32
    %c0_i32_0 = arith.constant 0 : i32
    %c0_i32_1 = arith.constant 0 : i32
    return %c0_i32, %c0_i32_0 : i32, i32
  }
  func.func @transform_5(%arg0: i32) -> (i32, i32) {
    %c0_i32 = arith.constant 0 : i32
    %c0_i32_0 = arith.constant 0 : i32
    %c0_i32_1 = arith.constant 0 : i32
    return %c0_i32, %c0_i32_0 : i32, i32
  }
  func.func @transform_6(%arg0: i32) -> (i32, i32) {
    %c0_i32 = arith.constant 0 : i32
    %c0_i32_0 = arith.constant 0 : i32
    %c0_i32_1 = arith.constant 0 : i32
    return %c0_i32, %c0_i32_0 : i32, i32
  }
  func.func @transform_7(%arg0: i32) -> (i32, i32) {
    %c0_i32 = arith.constant 0 : i32
    %c0_i32_0 = arith.constant 0 : i32
    return %arg0, %c0_i32 : i32, i32
  }
}

</mosaic_0001>

<llo_original>
// kernel: tpu_custom_call.1
$region0: #{tpu_custom_call.1}
  #allocation0 [shape = 'u32[]', space=smem, size = 0x4, offset = 0x4, fixed_abs, tag = 'smem constant byte address 0x4 - core index']
  #allocation1 [shape = 'u32[144,128]{1,0:T(1,128)}', space=vmem, size = 0x12000, scoped, tag = 'internal scratch']
  %s0 = inlined_call_operand.hbm [shape: bf16[128,128], index: 0, kind: input, shape index: {}]
  %s1 = inlined_call_operand.hbm [shape: bf16[128,128], index: 1, kind: input, shape index: {}]
  %s2 = inlined_call_operand.vmem [shape: f32[1,128], index: 2, kind: input, shape index: {}]
  %s3 = inlined_call_operand.vmem [shape: f32[1,128], index: 3, kind: input, shape index: {}]
  %s4 = inlined_call_operand.hbm [shape: f32[128,128], index: 4, kind: input, shape index: {}]
  %s5 = inlined_call_operand.vmem [shape: f32[1,128], index: 5, kind: input, shape index: {}]
  %s6 = inlined_call_operand.vmem [shape: f32[1,128], index: 6, kind: input, shape index: {}]
  %s7 = inlined_call_operand.hbm [shape: f32[2,128], index: 7, kind: output, shape index: {}]
  %s8 = sld [smem:[#allocation0]]
  $region50: #{tpu_custom_call.1} parent=0
    _
  %s10 = ssub.s32 1, %s8
  %s11 = scalar_select 0, %s10, %s8
  $region1: #{tpu_custom_call.1} parent=0
    #allocation2 [shape = 'u8[32768]{0}', space=vmem, size = 0x8000, scoped, tag = 'input window, operand 0, single buffered']
    #allocation3 [shape = 's32[1]{0}', space=sflag, size = 0x4, scoped, tag = 'scoped memory for tpu_custom_call.1']
    #allocation4 [shape = 's32[1]{0}', space=sflag, size = 0x4, scoped, tag = 'scoped memory for tpu_custom_call.1']
    #allocation5 [shape = 'u8[32768]{0}', space=vmem, size = 0x8000, scoped, tag = 'input window, operand 1, single buffered']
    #allocation6 [shape = 's32[1]{0}', space=sflag, size = 0x4, scoped, tag = 'scoped memory for tpu_custom_call.1']
    #allocation7 [shape = 'u8[65536]{0}', space=vmem, size = 0x10000, scoped, tag = 'input window, operand 4, single buffered']
    #allocation8 [shape = 'u8[1024]{0}', space=vmem, size = 0x400, scoped, tag = 'output window, operand 0, single buffered']
    %12 = vsyncpa [#allocation3], 0
    %13 = vsyncpa [#allocation6], 0
    %14 = vsyncpa [#allocation4], 0
    // Predicated region
    $region2: #{tpu_custom_call.1} parent=1 // pred_check
      _
    $region3: #{tpu_custom_call.1} parent=1 // pred_check_branch
      %16 = sbr.rel (0) target = $region5
    $region4: #{tpu_custom_call.1} parent=1 // pred_region
      %s18 = ssub.s32 1024, 1024
      %19 = vsyncadd [#allocation3], %s18
      %s20 = sshll.u32 [#allocation2], 4
      %s21 = int_to_ptr.vmem [resolvable:$true] %s20
      %26 = dma.hbm_to_vmem [thread:$0]  %s0, 1024, %s21, [#allocation3], 64, 64, 4
    $region5: #{tpu_custom_call.1} parent=1 // pred_fallthru
      _
    // Predicated region
    $region6: #{tpu_custom_call.1} parent=1 // pred_check
      _
    $region7: #{tpu_custom_call.1} parent=1 // pred_check_branch
      %28 = sbr.rel (0) target = $region9
    $region8: #{tpu_custom_call.1} parent=1 // pred_region
      %s30 = ssub.s32 1024, 1024
      %31 = vsyncadd [#allocation6], %s30
      %s32 = sshll.u32 [#allocation5], 4
      %s33 = int_to_ptr.vmem [resolvable:$true] %s32
      %38 = dma.hbm_to_vmem [thread:$0]  %s1, 1024, %s33, [#allocation6], 64, 64, 4
    $region9: #{tpu_custom_call.1} parent=1 // pred_fallthru
      _
    // Predicated region
    $region10: #{tpu_custom_call.1} parent=1 // pred_check
      _
    $region11: #{tpu_custom_call.1} parent=1 // pred_check_branch
      %40 = sbr.rel (0) target = $region13
    $region12: #{tpu_custom_call.1} parent=1 // pred_region
      _
    $region13: #{tpu_custom_call.1} parent=1 // pred_fallthru
      _
    // Predicated region
    $region14: #{tpu_custom_call.1} parent=1 // pred_check
      _
    $region15: #{tpu_custom_call.1} parent=1 // pred_check_branch
      %42 = sbr.rel (0) target = $region17
    $region16: #{tpu_custom_call.1} parent=1 // pred_region
      _
    $region17: #{tpu_custom_call.1} parent=1 // pred_fallthru
      _
    // Predicated region
    $region18: #{tpu_custom_call.1} parent=1 // pred_check
      _
    $region19: #{tpu_custom_call.1} parent=1 // pred_check_branch
      %44 = sbr.rel (0) target = $region21
    $region20: #{tpu_custom_call.1} parent=1 // pred_region
      %s46 = ssub.s32 2048, 2048
      %47 = vsyncadd [#allocation6], %s46
      %s48 = sshll.u32 [#allocation7], 4
      %s49 = int_to_ptr.vmem [resolvable:$true] %s48
      %54 = dma.hbm_to_vmem [thread:$0]  %s4, 2048, %s49, [#allocation6], 128, 128, 8
    $region21: #{tpu_custom_call.1} parent=1 // pred_fallthru
      _
    // Predicated region
    $region22: #{tpu_custom_call.1} parent=1 // pred_check
      _
    $region23: #{tpu_custom_call.1} parent=1 // pred_check_branch
      %56 = sbr.rel (0) target = $region25
    $region24: #{tpu_custom_call.1} parent=1 // pred_region
      _
    $region25: #{tpu_custom_call.1} parent=1 // pred_fallthru
      _
    // Predicated region
    $region26: #{tpu_custom_call.1} parent=1 // pred_check
      _
    $region27: #{tpu_custom_call.1} parent=1 // pred_check_branch
      %58 = sbr.rel (0) target = $region29
    $region28: #{tpu_custom_call.1} parent=1 // pred_region
      _
    $region29: #{tpu_custom_call.1} parent=1 // pred_fallthru
      _
    // Predicated region
    $region30: #{tpu_custom_call.1} parent=1 // pred_check
      _
    $region31: #{tpu_custom_call.1} parent=1 // pred_check_branch
      %60 = sbr.rel (0) target = $region33
    $region32: #{tpu_custom_call.1} parent=1 // pred_region
      %61 = dma.done [#allocation3], 1024
    $region33: #{tpu_custom_call.1} parent=1 // pred_fallthru
      _
    // Predicated region
    $region34: #{tpu_custom_call.1} parent=1 // pred_check
      _
    $region35: #{tpu_custom_call.1} parent=1 // pred_check_branch
      %63 = sbr.rel (0) target = $region37
    $region36: #{tpu_custom_call.1} parent=1 // pred_region
      %64 = dma.done [#allocation6], 1024
    $region37: #{tpu_custom_call.1} parent=1 // pred_fallthru
      _
    // Predicated region
    $region38: #{tpu_custom_call.1} parent=1 // pred_check
      _
    $region39: #{tpu_custom_call.1} parent=1 // pred_check_branch
      %66 = sbr.rel (0) target = $region41
    $region40: #{tpu_custom_call.1} parent=1 // pred_region
      %67 = dma.done [#allocation6], 2048
    $region41: #{tpu_custom_call.1} parent=1 // pred_fallthru
      _
    %v69 = vld [vmem:[#allocation2] sm:$0xf]
    %v70 = vld [vmem:[#allocation2 + $0x4] sm:$0xf]
    %v71 = vld [vmem:[#allocation2 + $0x8] sm:$0xf]
    %v72 = vld [vmem:[#allocation2 + $0xc] sm:$0xf]
    %v73 = vld [vmem:[#allocation2 + $0x10] sm:$0xf]
    %v74 = vld [vmem:[#allocation2 + $0x14] sm:$0xf]
    %v75 = vld [vmem:[#allocation2 + $0x18] sm:$0xf]
    %v76 = vld [vmem:[#allocation2 + $0x1c] sm:$0xf]
    %v77 = vld [vmem:[#allocation2 + $0x20] sm:$0xf]
    %v78 = vld [vmem:[#allocation2 + $0x24] sm:$0xf]
    %v79 = vld [vmem:[#allocation2 + $0x28] sm:$0xf]
    %v80 = vld [vmem:[#allocation2 + $0x2c] sm:$0xf]
    %v81 = vld [vmem:[#allocation2 + $0x30] sm:$0xf]
    %v82 = vld [vmem:[#allocation2 + $0x34] sm:$0xf]
    %v83 = vld [vmem:[#allocation2 + $0x38] sm:$0xf]
    %v84 = vld [vmem:[#allocation2 + $0x3c] sm:$0xf]
    %v85 = vunpack.c.l.bf16 %v69
    %v86 = vunpack.c.l.bf16 %v70
    %v87 = vunpack.c.l.bf16 %v71
    %v88 = vunpack.c.l.bf16 %v72
    %v89 = vunpack.c.l.bf16 %v73
    %v90 = vunpack.c.l.bf16 %v74
    %v91 = vunpack.c.l.bf16 %v75
    %v92 = vunpack.c.l.bf16 %v76
    %v93 = vunpack.c.l.bf16 %v77
    %v94 = vunpack.c.l.bf16 %v78
    %v95 = vunpack.c.l.bf16 %v79
    %v96 = vunpack.c.l.bf16 %v80
    %v97 = vunpack.c.l.bf16 %v81
    %v98 = vunpack.c.l.bf16 %v82
    %v99 = vunpack.c.l.bf16 %v83
    %v100 = vunpack.c.l.bf16 %v84
    %v101 = vld [vmem:[#allocation5] sm:$0xf]
    %v102 = vld [vmem:[#allocation5 + $0x4] sm:$0xf]
    %v103 = vld [vmem:[#allocation5 + $0x8] sm:$0xf]
    %v104 = vld [vmem:[#allocation5 + $0xc] sm:$0xf]
    %v105 = vld [vmem:[#allocation5 + $0x10] sm:$0xf]
    %v106 = vld [vmem:[#allocation5 + $0x14] sm:$0xf]
    %v107 = vld [vmem:[#allocation5 + $0x18] sm:$0xf]
    %v108 = vld [vmem:[#allocation5 + $0x1c] sm:$0xf]
    %v109 = vld [vmem:[#allocation5 + $0x20] sm:$0xf]
    %v110 = vld [vmem:[#allocation5 + $0x24] sm:$0xf]
    %v111 = vld [vmem:[#allocation5 + $0x28] sm:$0xf]
    %v112 = vld [vmem:[#allocation5 + $0x2c] sm:$0xf]
    %v113 = vld [vmem:[#allocation5 + $0x30] sm:$0xf]
    %v114 = vld [vmem:[#allocation5 + $0x34] sm:$0xf]
    %v115 = vld [vmem:[#allocation5 + $0x38] sm:$0xf]
    %v116 = vld [vmem:[#allocation5 + $0x3c] sm:$0xf]
    %v117 = vld [vmem:[%s2] sm:$0x1]
    %v119 = vlaneseq
    %v120 = vshrl.u32 %v119, 7
    %v121 = vsub.s32 0, %v120
    %v122 = vrot.slane %v117, %v121
    %v140 = vunpack.c.l.b16 %v69
    %v141 = vunpack.c.l.b16 %v70
    %v142 = vunpack.c.l.b16 %v71
    %v143 = vunpack.c.l.b16 %v72
    %v144 = vunpack.c.l.b16 %v73
    %v145 = vunpack.c.l.b16 %v74
    %v146 = vunpack.c.l.b16 %v75
    %v147 = vunpack.c.l.b16 %v76
    %v148 = vunpack.c.l.b16 %v77
    %v149 = vunpack.c.l.b16 %v78
    %v150 = vunpack.c.l.b16 %v79
    %v151 = vunpack.c.l.b16 %v80
    %v152 = vunpack.c.l.b16 %v81
    %v153 = vunpack.c.l.b16 %v82
    %v154 = vunpack.c.l.b16 %v83
    %v155 = vunpack.c.l.b16 %v84
    %v156 = vpack.c.b16 %v141, %v140
    %v157 = vpack.c.b16 %v143, %v142
    %v158 = vpack.c.b16 %v145, %v144
    %v159 = vpack.c.b16 %v147, %v146
    %v160 = vpack.c.b16 %v149, %v148
    %v161 = vpack.c.b16 %v151, %v150
    %v162 = vpack.c.b16 %v153, %v152
    %v163 = vpack.c.b16 %v155, %v154
    %v188 = vunpack.c.l.b16 %v101
    %v189 = vunpack.c.l.b16 %v102
    %v190 = vunpack.c.l.b16 %v103
    %v191 = vunpack.c.l.b16 %v104
    %v192 = vunpack.c.l.b16 %v105
    %v193 = vunpack.c.l.b16 %v106
    %v194 = vunpack.c.l.b16 %v107
    %v195 = vunpack.c.l.b16 %v108
    %v196 = vunpack.c.l.b16 %v109
    %v197 = vunpack.c.l.b16 %v110
    %v198 = vunpack.c.l.b16 %v111
    %v199 = vunpack.c.l.b16 %v112
    %v200 = vunpack.c.l.b16 %v113
    %v201 = vunpack.c.l.b16 %v114
    %v202 = vunpack.c.l.b16 %v115
    %v203 = vunpack.c.l.b16 %v116
    %v204 = vpack.c.b16 %v189, %v188
    %v205 = vpack.c.b16 %v191, %v190
    %v206 = vpack.c.b16 %v193, %v192
    %v207 = vpack.c.b16 %v195, %v194
    %v208 = vpack.c.b16 %v197, %v196
    %v209 = vpack.c.b16 %v199, %v198
    %v210 = vpack.c.b16 %v201, %v200
    %v211 = vpack.c.b16 %v203, %v202
    %220 = vmatprep.subr.bf16.mxu0 0
    %221 = vmatpush1.bf16.msra.mxu0 %v204
    %222 = vmatprep.subr.bf16.mxu0 0
    %223 = vmatpush1.bf16.msra.mxu0 %v205
    %224 = vmatprep.subr.bf16.mxu0 0
    %225 = vmatpush1.bf16.msra.mxu0 %v206
    %226 = vmatprep.subr.bf16.mxu0 0
    %227 = vmatpush1.bf16.msra.mxu0 %v207
    %228 = vmatprep.subr.bf16.mxu0 0
    %229 = vmatpush1.bf16.msra.mxu0 %v208
    %230 = vmatprep.subr.bf16.mxu0 0
    %231 = vmatpush1.bf16.msra.mxu0 %v209
    %232 = vmatprep.subr.bf16.mxu0 0
    %233 = vmatpush1.bf16.msra.mxu0 %v210
    %234 = vmatprep.subr.bf16.mxu0 0
    %235 = vmatpush1.bf16.msra.mxu0 %v211
    %236 = vmatprep.subr.bf16.mxu0 0
    %237 = vmatpush1.bf16.msra.mxu0 0
    %238 = vmatprep.subr.bf16.mxu0 0
    %239 = vmatpush1.bf16.msra.mxu0 0
    %240 = vmatprep.subr.bf16.mxu0 0
    %241 = vmatpush1.bf16.msra.mxu0 0
    %242 = vmatprep.subr.bf16.mxu0 0
    %243 = vmatpush1.bf16.msra.mxu0 0
    %244 = vmatprep.subr.bf16.mxu0 0
    %245 = vmatpush1.bf16.msra.mxu0 0
    %246 = vmatprep.subr.bf16.mxu0 0
    %247 = vmatpush1.bf16.msra.mxu0 0
    %248 = vmatprep.subr.bf16.mxu0 0
    %249 = vmatpush1.bf16.msra.mxu0 0
    %250 = vmatprep.subr.bf16.mxu0 0
    %251 = vmatpush1.bf16.msra.mxu0 0
    %252 = vmatprep.mubr.bf16.mxu0 0
    %253 = vmatmul.mubr.bf16.gmra.mrb[0].mxu0 %v156
    %v254 = vpop.f32.mrb[0].mxu0
    %v255 = vadd.f32 %v122, %v254
    %v256 = vpop.f32.mrb[0].mxu0
    %v257 = vpop.f32.mrb[0].mxu0
    %v258 = vadd.f32 %v122, %v257
    %v259 = vpop.f32.mrb[0].mxu0
    %260 = vmatprep.mubr.bf16.mxu0 0
    %261 = vmatmul.mubr.bf16.gmra.mrb[0].mxu0 %v157
    %v262 = vpop.f32.mrb[0].mxu0
    %v263 = vadd.f32 %v122, %v262
    %v264 = vpop.f32.mrb[0].mxu0
    %v265 = vpop.f32.mrb[0].mxu0
    %v266 = vadd.f32 %v122, %v265
    %v267 = vpop.f32.mrb[0].mxu0
    %268 = vmatprep.mubr.bf16.mxu0 0
    %269 = vmatmul.mubr.bf16.gmra.mrb[0].mxu0 %v158
    %v270 = vpop.f32.mrb[0].mxu0
    %v271 = vadd.f32 %v122, %v270
    %v272 = vpop.f32.mrb[0].mxu0
    %v273 = vpop.f32.mrb[0].mxu0
    %v274 = vadd.f32 %v122, %v273
    %v275 = vpop.f32.mrb[0].mxu0
    %276 = vmatprep.mubr.bf16.mxu0 0
    %277 = vmatmul.mubr.bf16.gmra.mrb[0].mxu0 %v159
    %v278 = vpop.f32.mrb[0].mxu0
    %v279 = vadd.f32 %v122, %v278
    %v280 = vpop.f32.mrb[0].mxu0
    %v281 = vpop.f32.mrb[0].mxu0
    %v282 = vadd.f32 %v122, %v281
    %v283 = vpop.f32.mrb[0].mxu0
    %284 = vmatprep.mubr.bf16.mxu0 0
    %285 = vmatmul.mubr.bf16.gmra.mrb[0].mxu0 %v160
    %v286 = vpop.f32.mrb[0].mxu0
    %v287 = vadd.f32 %v122, %v286
    %v288 = vpop.f32.mrb[0].mxu0
    %v289 = vpop.f32.mrb[0].mxu0
    %v290 = vadd.f32 %v122, %v289
    %v291 = vpop.f32.mrb[0].mxu0
    %292 = vmatprep.mubr.bf16.mxu0 0
    %293 = vmatmul.mubr.bf16.gmra.mrb[0].mxu0 %v161
    %v294 = vpop.f32.mrb[0].mxu0
    %v295 = vadd.f32 %v122, %v294
    %v296 = vpop.f32.mrb[0].mxu0
    %v297 = vpop.f32.mrb[0].mxu0
    %v298 = vadd.f32 %v122, %v297
    %v299 = vpop.f32.mrb[0].mxu0
    %300 = vmatprep.mubr.bf16.mxu0 0
    %301 = vmatmul.mubr.bf16.gmra.mrb[0].mxu0 %v162
    %v302 = vpop.f32.mrb[0].mxu0
    %v303 = vadd.f32 %v122, %v302
    %v304 = vpop.f32.mrb[0].mxu0
    %v305 = vpop.f32.mrb[0].mxu0
    %v306 = vadd.f32 %v122, %v305
    %v307 = vpop.f32.mrb[0].mxu0
    %308 = vmatprep.mubr.bf16.mxu0 0
    %309 = vmatmul.mubr.bf16.gmra.mrb[0].mxu0 %v163
    %v310 = vpop.f32.mrb[0].mxu0
    %v311 = vadd.f32 %v122, %v310
    %v312 = vpop.f32.mrb[0].mxu0
    %v313 = vpop.f32.mrb[0].mxu0
    %v314 = vadd.f32 %v122, %v313
    %v315 = vpop.f32.mrb[0].mxu0
    %316 = vdwg.mxu0
    %v317 = vtanh.pop %v255
    %v318 = vtanh.pop %v258
    %v319 = vtanh.pop %v263
    %v320 = vtanh.pop %v266
    %v321 = vtanh.pop %v271
    %v322 = vtanh.pop %v274
    %v323 = vtanh.pop %v279
    %v324 = vtanh.pop %v282
    %v325 = vtanh.pop %v287
    %v326 = vtanh.pop %v290
    %v327 = vtanh.pop %v295
    %v328 = vtanh.pop %v298
    %v329 = vtanh.pop %v303
    %v330 = vtanh.pop %v306
    %v331 = vtanh.pop %v311
    %v332 = vtanh.pop %v314
    %v333 = vld [vmem:[%s3] sm:$0x1]
    %v335 = vlaneseq
    %v336 = vshrl.u32 %v335, 7
    %v337 = vsub.s32 0, %v336
    %v338 = vrot.slane %v333, %v337
    %v340 = vmul.f32 %v317, %v338
    %v341 = vmul.f32 %v318, %v338
    %v342 = vmul.f32 %v319, %v338
    %v343 = vmul.f32 %v320, %v338
    %v344 = vmul.f32 %v321, %v338
    %v345 = vmul.f32 %v322, %v338
    %v346 = vmul.f32 %v323, %v338
    %v347 = vmul.f32 %v324, %v338
    %v348 = vmul.f32 %v325, %v338
    %v349 = vmul.f32 %v326, %v338
    %v350 = vmul.f32 %v327, %v338
    %v351 = vmul.f32 %v328, %v338
    %v352 = vmul.f32 %v329, %v338
    %v353 = vmul.f32 %v330, %v338
    %v354 = vmul.f32 %v331, %v338
    %v355 = vmul.f32 %v332, %v338
    %356 = vadd.xlane.f32.xlu0 %v340
    %v357 = vpop.xlane.xlu0 %356
    %358 = vadd.xlane.f32.xlu0 %v341
    %v359 = vpop.xlane.xlu0 %358
    %360 = vadd.xlane.f32.xlu0 %v342
    %v361 = vpop.xlane.xlu0 %360
    %362 = vadd.xlane.f32.xlu0 %v343
    %v363 = vpop.xlane.xlu0 %362
    %364 = vadd.xlane.f32.xlu0 %v344
    %v365 = vpop.xlane.xlu0 %364
    %366 = vadd.xlane.f32.xlu0 %v345
    %v367 = vpop.xlane.xlu0 %366
    %368 = vadd.xlane.f32.xlu0 %v346
    %v369 = vpop.xlane.xlu0 %368
    %370 = vadd.xlane.f32.xlu0 %v347
    %v371 = vpop.xlane.xlu0 %370
    %372 = vadd.xlane.f32.xlu0 %v348
    %v373 = vpop.xlane.xlu0 %372
    %374 = vadd.xlane.f32.xlu0 %v349
    %v375 = vpop.xlane.xlu0 %374
    %376 = vadd.xlane.f32.xlu0 %v350
    %v377 = vpop.xlane.xlu0 %376
    %378 = vadd.xlane.f32.xlu0 %v351
    %v379 = vpop.xlane.xlu0 %378
    %380 = vadd.xlane.f32.xlu0 %v352
    %v381 = vpop.xlane.xlu0 %380
    %382 = vadd.xlane.f32.xlu0 %v353
    %v383 = vpop.xlane.xlu0 %382
    %384 = vadd.xlane.f32.xlu0 %v354
    %v385 = vpop.xlane.xlu0 %384
    %386 = vadd.xlane.f32.xlu0 %v355
    %v387 = vpop.xlane.xlu0 %386
    %v388 = vtanh.pop %v357
    %v389 = vtanh.pop %v359
    %v390 = vtanh.pop %v361
    %v391 = vtanh.pop %v363
    %v392 = vtanh.pop %v365
    %v393 = vtanh.pop %v367
    %v394 = vtanh.pop %v369
    %v395 = vtanh.pop %v371
    %v396 = vtanh.pop %v373
    %v397 = vtanh.pop %v375
    %v398 = vtanh.pop %v377
    %v399 = vtanh.pop %v379
    %v400 = vtanh.pop %v381
    %v401 = vtanh.pop %v383
    %v402 = vtanh.pop %v385
    %v403 = vtanh.pop %v387
    %v404 = vlaneseq
    %v405 = vshrl.u32 %v404, 7
    %vm406 = vcmp.lt.s32.totalorder %v405, 6
    %v407 = vsel %vm406, 1, 0
    %vm408 = vcmp.eq.s32.totalorder %v407, 1
    %v409 = vsel %vm408, %v388, -1e+30
    %v410 = vsel %vm408, %v389, -1e+30
    %v411 = vsel %vm408, %v390, -1e+30
    %v412 = vsel %vm408, %v391, -1e+30
    %v413 = vsel %vm408, %v392, -1e+30
    %v414 = vsel %vm408, %v393, -1e+30
    %v415 = vsel %vm408, %v394, -1e+30
    %v416 = vsel %vm408, %v395, -1e+30
    %v417 = vsel %vm408, %v396, -1e+30
    %v418 = vsel %vm408, %v397, -1e+30
    %v419 = vsel %vm408, %v398, -1e+30
    %v420 = vsel %vm408, %v399, -1e+30
    %v421 = vsel %vm408, %v400, -1e+30
    %v422 = vsel %vm408, %v401, -1e+30
    %v423 = vsel %vm408, %v402, -1e+30
    %v424 = vsel %vm408, %v403, -1e+30
    %v425 = vrot.slane %v409, 4
    %v426 = vmax.f32 %v409, %v425
    %v427 = vrot.slane %v426, 2
    %v428 = vmax.f32 %v426, %v427
    %v429 = vrot.slane %v428, 1
    %v430 = vmax.f32 %v428, %v429
    %v431 = vrot.slane %v410, 4
    %v432 = vmax.f32 %v410, %v431
    %v433 = vrot.slane %v432, 2
    %v434 = vmax.f32 %v432, %v433
    %v435 = vrot.slane %v434, 1
    %v436 = vmax.f32 %v434, %v435
    %v437 = vrot.slane %v411, 4
    %v438 = vmax.f32 %v411, %v437
    %v439 = vrot.slane %v438, 2
    %v440 = vmax.f32 %v438, %v439
    %v441 = vrot.slane %v440, 1
    %v442 = vmax.f32 %v440, %v441
    %v443 = vrot.slane %v412, 4
    %v444 = vmax.f32 %v412, %v443
    %v445 = vrot.slane %v444, 2
    %v446 = vmax.f32 %v444, %v445
    %v447 = vrot.slane %v446, 1
    %v448 = vmax.f32 %v446, %v447
    %v449 = vrot.slane %v413, 4
    %v450 = vmax.f32 %v413, %v449
    %v451 = vrot.slane %v450, 2
    %v452 = vmax.f32 %v450, %v451
    %v453 = vrot.slane %v452, 1
    %v454 = vmax.f32 %v452, %v453
    %v455 = vrot.slane %v414, 4
    %v456 = vmax.f32 %v414, %v455
    %v457 = vrot.slane %v456, 2
    %v458 = vmax.f32 %v456, %v457
    %v459 = vrot.slane %v458, 1
    %v460 = vmax.f32 %v458, %v459
    %v461 = vrot.slane %v415, 4
    %v462 = vmax.f32 %v415, %v461
    %v463 = vrot.slane %v462, 2
    %v464 = vmax.f32 %v462, %v463
    %v465 = vrot.slane %v464, 1
    %v466 = vmax.f32 %v464, %v465
    %v467 = vrot.slane %v416, 4
    %v468 = vmax.f32 %v416, %v467
    %v469 = vrot.slane %v468, 2
    %v470 = vmax.f32 %v468, %v469
    %v471 = vrot.slane %v470, 1
    %v472 = vmax.f32 %v470, %v471
    %v473 = vrot.slane %v417, 4
    %v474 = vmax.f32 %v417, %v473
    %v475 = vrot.slane %v474, 2
    %v476 = vmax.f32 %v474, %v475
    %v477 = vrot.slane %v476, 1
    %v478 = vmax.f32 %v476, %v477
    %v479 = vrot.slane %v418, 4
    %v480 = vmax.f32 %v418, %v479
    %v481 = vrot.slane %v480, 2
    %v482 = vmax.f32 %v480, %v481
    %v483 = vrot.slane %v482, 1
    %v484 = vmax.f32 %v482, %v483
    %v485 = vrot.slane %v419, 4
    %v486 = vmax.f32 %v419, %v485
    %v487 = vrot.slane %v486, 2
    %v488 = vmax.f32 %v486, %v487
    %v489 = vrot.slane %v488, 1
    %v490 = vmax.f32 %v488, %v489
    %v491 = vrot.slane %v420, 4
    %v492 = vmax.f32 %v420, %v491
    %v493 = vrot.slane %v492, 2
    %v494 = vmax.f32 %v492, %v493
    %v495 = vrot.slane %v494, 1
    %v496 = vmax.f32 %v494, %v495
    %v497 = vrot.slane %v421, 4
    %v498 = vmax.f32 %v421, %v497
    %v499 = vrot.slane %v498, 2
    %v500 = vmax.f32 %v498, %v499
    %v501 = vrot.slane %v500, 1
    %v502 = vmax.f32 %v500, %v501
    %v503 = vrot.slane %v422, 4
    %v504 = vmax.f32 %v422, %v503
    %v505 = vrot.slane %v504, 2
    %v506 = vmax.f32 %v504, %v505
    %v507 = vrot.slane %v506, 1
    %v508 = vmax.f32 %v506, %v507
    %v509 = vrot.slane %v423, 4
    %v510 = vmax.f32 %v423, %v509
    %v511 = vrot.slane %v510, 2
    %v512 = vmax.f32 %v510, %v511
    %v513 = vrot.slane %v512, 1
    %v514 = vmax.f32 %v512, %v513
    %v515 = vrot.slane %v424, 4
    %v516 = vmax.f32 %v424, %v515
    %v517 = vrot.slane %v516, 2
    %v518 = vmax.f32 %v516, %v517
    %v519 = vrot.slane %v518, 1
    %v520 = vmax.f32 %v518, %v519
    %v521 = vsub.f32 %v409, %v430
    %v522 = vsub.f32 %v410, %v436
    %v523 = vsub.f32 %v411, %v442
    %v524 = vsub.f32 %v412, %v448
    %v525 = vsub.f32 %v413, %v454
    %v526 = vsub.f32 %v414, %v460
    %v527 = vsub.f32 %v415, %v466
    %v528 = vsub.f32 %v416, %v472
    %v529 = vsub.f32 %v417, %v478
    %v530 = vsub.f32 %v418, %v484
    %v531 = vsub.f32 %v419, %v490
    %v532 = vsub.f32 %v420, %v496
    %v533 = vsub.f32 %v421, %v502
    %v534 = vsub.f32 %v422, %v508
    %v535 = vsub.f32 %v423, %v514
    %v536 = vsub.f32 %v424, %v520
    %v537 = vmul.f32 %v521, 1.442695
    %v538 = vpow.pop %v537
    %v539 = vmul.f32 %v522, 1.442695
    %v540 = vpow.pop %v539
    %v541 = vmul.f32 %v523, 1.442695
    %v542 = vpow.pop %v541
    %v543 = vmul.f32 %v524, 1.442695
    %v544 = vpow.pop %v543
    %v545 = vmul.f32 %v525, 1.442695
    %v546 = vpow.pop %v545
    %v547 = vmul.f32 %v526, 1.442695
    %v548 = vpow.pop %v547
    %v549 = vmul.f32 %v527, 1.442695
    %v550 = vpow.pop %v549
    %v551 = vmul.f32 %v528, 1.442695
    %v552 = vpow.pop %v551
    %v553 = vmul.f32 %v529, 1.442695
    %v554 = vpow.pop %v553
    %v555 = vmul.f32 %v530, 1.442695
    %v556 = vpow.pop %v555
    %v557 = vmul.f32 %v531, 1.442695
    %v558 = vpow.pop %v557
    %v559 = vmul.f32 %v532, 1.442695
    %v560 = vpow.pop %v559
    %v561 = vmul.f32 %v533, 1.442695
    %v562 = vpow.pop %v561
    %v563 = vmul.f32 %v534, 1.442695
    %v564 = vpow.pop %v563
    %v565 = vmul.f32 %v535, 1.442695
    %v566 = vpow.pop %v565
    %v567 = vmul.f32 %v536, 1.442695
    %v568 = vpow.pop %v567
    %v569 = vrot.slane %v538, 4
    %v570 = vadd.f32 %v538, %v569
    %v571 = vrot.slane %v570, 2
    %v572 = vadd.f32 %v570, %v571
    %v573 = vrot.slane %v572, 1
    %v574 = vadd.f32 %v572, %v573
    %v575 = vrot.slane %v540, 4
    %v576 = vadd.f32 %v540, %v575
    %v577 = vrot.slane %v576, 2
    %v578 = vadd.f32 %v576, %v577
    %v579 = vrot.slane %v578, 1
    %v580 = vadd.f32 %v578, %v579
    %v581 = vrot.slane %v542, 4
    %v582 = vadd.f32 %v542, %v581
    %v583 = vrot.slane %v582, 2
    %v584 = vadd.f32 %v582, %v583
    %v585 = vrot.slane %v584, 1
    %v586 = vadd.f32 %v584, %v585
    %v587 = vrot.slane %v544, 4
    %v588 = vadd.f32 %v544, %v587
    %v589 = vrot.slane %v588, 2
    %v590 = vadd.f32 %v588, %v589
    %v591 = vrot.slane %v590, 1
    %v592 = vadd.f32 %v590, %v591
    %v593 = vrot.slane %v546, 4
    %v594 = vadd.f32 %v546, %v593
    %v595 = vrot.slane %v594, 2
    %v596 = vadd.f32 %v594, %v595
    %v597 = vrot.slane %v596, 1
    %v598 = vadd.f32 %v596, %v597
    %v599 = vrot.slane %v548, 4
    %v600 = vadd.f32 %v548, %v599
    %v601 = vrot.slane %v600, 2
    %v602 = vadd.f32 %v600, %v601
    %v603 = vrot.slane %v602, 1
    %v604 = vadd.f32 %v602, %v603
    %v605 = vrot.slane %v550, 4
    %v606 = vadd.f32 %v550, %v605
    %v607 = vrot.slane %v606, 2
    %v608 = vadd.f32 %v606, %v607
    %v609 = vrot.slane %v608, 1
    %v610 = vadd.f32 %v608, %v609
    %v611 = vrot.slane %v552, 4
    %v612 = vadd.f32 %v552, %v611
    %v613 = vrot.slane %v612, 2
    %v614 = vadd.f32 %v612, %v613
    %v615 = vrot.slane %v614, 1
    %v616 = vadd.f32 %v614, %v615
    %v617 = vrot.slane %v554, 4
    %v618 = vadd.f32 %v554, %v617
    %v619 = vrot.slane %v618, 2
    %v620 = vadd.f32 %v618, %v619
    %v621 = vrot.slane %v620, 1
    %v622 = vadd.f32 %v620, %v621
    %v623 = vrot.slane %v556, 4
    %v624 = vadd.f32 %v556, %v623
    %v625 = vrot.slane %v624, 2
    %v626 = vadd.f32 %v624, %v625
    %v627 = vrot.slane %v626, 1
    %v628 = vadd.f32 %v626, %v627
    %v629 = vrot.slane %v558, 4
    %v630 = vadd.f32 %v558, %v629
    %v631 = vrot.slane %v630, 2
    %v632 = vadd.f32 %v630, %v631
    %v633 = vrot.slane %v632, 1
    %v634 = vadd.f32 %v632, %v633
    %v635 = vrot.slane %v560, 4
    %v636 = vadd.f32 %v560, %v635
    %v637 = vrot.slane %v636, 2
    %v638 = vadd.f32 %v636, %v637
    %v639 = vrot.slane %v638, 1
    %v640 = vadd.f32 %v638, %v639
    %v641 = vrot.slane %v562, 4
    %v642 = vadd.f32 %v562, %v641
    %v643 = vrot.slane %v642, 2
    %v644 = vadd.f32 %v642, %v643
    %v645 = vrot.slane %v644, 1
    %v646 = vadd.f32 %v644, %v645
    %v647 = vrot.slane %v564, 4
    %v648 = vadd.f32 %v564, %v647
    %v649 = vrot.slane %v648, 2
    %v650 = vadd.f32 %v648, %v649
    %v651 = vrot.slane %v650, 1
    %v652 = vadd.f32 %v650, %v651
    %v653 = vrot.slane %v566, 4
    %v654 = vadd.f32 %v566, %v653
    %v655 = vrot.slane %v654, 2
    %v656 = vadd.f32 %v654, %v655
    %v657 = vrot.slane %v656, 1
    %v658 = vadd.f32 %v656, %v657
    %v659 = vrot.slane %v568, 4
    %v660 = vadd.f32 %v568, %v659
    %v661 = vrot.slane %v660, 2
    %v662 = vadd.f32 %v660, %v661
    %v663 = vrot.slane %v662, 1
    %v664 = vadd.f32 %v662, %v663
    %v665 = vrcp.pop %v574
    %v666 = vrcp.pop %v580
    %v667 = vrcp.pop %v586
    %v668 = vrcp.pop %v592
    %v669 = vrcp.pop %v598
    %v670 = vrcp.pop %v604
    %v671 = vrcp.pop %v610
    %v672 = vrcp.pop %v616
    %v673 = vrcp.pop %v622
    %v674 = vrcp.pop %v628
    %v675 = vrcp.pop %v634
    %v676 = vrcp.pop %v640
    %v677 = vrcp.pop %v646
    %v678 = vrcp.pop %v652
    %v679 = vrcp.pop %v658
    %v680 = vrcp.pop %v664
    %v681 = vmul.f32 %v538, %v665
    %v682 = vmul.f32 %v540, %v666
    %v683 = vmul.f32 %v542, %v667
    %v684 = vmul.f32 %v544, %v668
    %v685 = vmul.f32 %v546, %v669
    %v686 = vmul.f32 %v548, %v670
    %v687 = vmul.f32 %v550, %v671
    %v688 = vmul.f32 %v552, %v672
    %v689 = vmul.f32 %v554, %v673
    %v690 = vmul.f32 %v556, %v674
    %v691 = vmul.f32 %v558, %v675
    %v692 = vmul.f32 %v560, %v676
    %v693 = vmul.f32 %v562, %v677
    %v694 = vmul.f32 %v564, %v678
    %v695 = vmul.f32 %v566, %v679
    %v696 = vmul.f32 %v568, %v680
    %v697 = vmul.f32 %v85, %v681
    %v698 = vmul.f32 %v86, %v682
    %v699 = vmul.f32 %v87, %v683
    %v700 = vmul.f32 %v88, %v684
    %v701 = vmul.f32 %v89, %v685
    %v702 = vmul.f32 %v90, %v686
    %v703 = vmul.f32 %v91, %v687
    %v704 = vmul.f32 %v92, %v688
    %v705 = vmul.f32 %v93, %v689
    %v706 = vmul.f32 %v94, %v690
    %v707 = vmul.f32 %v95, %v691
    %v708 = vmul.f32 %v96, %v692
    %v709 = vmul.f32 %v97, %v693
    %v710 = vmul.f32 %v98, %v694
    %v711 = vmul.f32 %v99, %v695
    %v712 = vmul.f32 %v100, %v696
    %v713 = vrot.slane %v697, 4
    %v714 = vadd.f32 %v697, %v713
    %v715 = vrot.slane %v714, 2
    %v716 = vadd.f32 %v714, %v715
    %v717 = vrot.slane %v716, 1
    %v718 = vadd.f32 %v716, %v717
    %v719 = vrot.slane %v698, 4
    %v720 = vadd.f32 %v698, %v719
    %v721 = vrot.slane %v720, 2
    %v722 = vadd.f32 %v720, %v721
    %v723 = vrot.slane %v722, 1
    %v724 = vadd.f32 %v722, %v723
    %v725 = vrot.slane %v699, 4
    %v726 = vadd.f32 %v699, %v725
    %v727 = vrot.slane %v726, 2
    %v728 = vadd.f32 %v726, %v727
    %v729 = vrot.slane %v728, 1
    %v730 = vadd.f32 %v728, %v729
    %v731 = vrot.slane %v700, 4
    %v732 = vadd.f32 %v700, %v731
    %v733 = vrot.slane %v732, 2
    %v734 = vadd.f32 %v732, %v733
    %v735 = vrot.slane %v734, 1
    %v736 = vadd.f32 %v734, %v735
    %v737 = vrot.slane %v701, 4
    %v738 = vadd.f32 %v701, %v737
    %v739 = vrot.slane %v738, 2
    %v740 = vadd.f32 %v738, %v739
    %v741 = vrot.slane %v740, 1
    %v742 = vadd.f32 %v740, %v741
    %v743 = vrot.slane %v702, 4
    %v744 = vadd.f32 %v702, %v743
    %v745 = vrot.slane %v744, 2
    %v746 = vadd.f32 %v744, %v745
    %v747 = vrot.slane %v746, 1
    %v748 = vadd.f32 %v746, %v747
    %v749 = vrot.slane %v703, 4
    %v750 = vadd.f32 %v703, %v749
    %v751 = vrot.slane %v750, 2
    %v752 = vadd.f32 %v750, %v751
    %v753 = vrot.slane %v752, 1
    %v754 = vadd.f32 %v752, %v753
    %v755 = vrot.slane %v704, 4
    %v756 = vadd.f32 %v704, %v755
    %v757 = vrot.slane %v756, 2
    %v758 = vadd.f32 %v756, %v757
    %v759 = vrot.slane %v758, 1
    %v760 = vadd.f32 %v758, %v759
    %v761 = vrot.slane %v705, 4
    %v762 = vadd.f32 %v705, %v761
    %v763 = vrot.slane %v762, 2
    %v764 = vadd.f32 %v762, %v763
    %v765 = vrot.slane %v764, 1
    %v766 = vadd.f32 %v764, %v765
    %v767 = vrot.slane %v706, 4
    %v768 = vadd.f32 %v706, %v767
    %v769 = vrot.slane %v768, 2
    %v770 = vadd.f32 %v768, %v769
    %v771 = vrot.slane %v770, 1
    %v772 = vadd.f32 %v770, %v771
    %v773 = vrot.slane %v707, 4
    %v774 = vadd.f32 %v707, %v773
    %v775 = vrot.slane %v774, 2
    %v776 = vadd.f32 %v774, %v775
    %v777 = vrot.slane %v776, 1
    %v778 = vadd.f32 %v776, %v777
    %v779 = vrot.slane %v708, 4
    %v780 = vadd.f32 %v708, %v779
    %v781 = vrot.slane %v780, 2
    %v782 = vadd.f32 %v780, %v781
    %v783 = vrot.slane %v782, 1
    %v784 = vadd.f32 %v782, %v783
    %v785 = vrot.slane %v709, 4
    %v786 = vadd.f32 %v709, %v785
    %v787 = vrot.slane %v786, 2
    %v788 = vadd.f32 %v786, %v787
    %v789 = vrot.slane %v788, 1
    %v790 = vadd.f32 %v788, %v789
    %v791 = vrot.slane %v710, 4
    %v792 = vadd.f32 %v710, %v791
    %v793 = vrot.slane %v792, 2
    %v794 = vadd.f32 %v792, %v793
    %v795 = vrot.slane %v794, 1
    %v796 = vadd.f32 %v794, %v795
    %v797 = vrot.slane %v711, 4
    %v798 = vadd.f32 %v711, %v797
    %v799 = vrot.slane %v798, 2
    %v800 = vadd.f32 %v798, %v799
    %v801 = vrot.slane %v800, 1
    %v802 = vadd.f32 %v800, %v801
    %v803 = vrot.slane %v712, 4
    %v804 = vadd.f32 %v712, %v803
    %v805 = vrot.slane %v804, 2
    %v806 = vadd.f32 %v804, %v805
    %v807 = vrot.slane %v806, 1
    %v808 = vadd.f32 %v806, %v807
    %v809 = vld [vmem:[#allocation7] sm:$0xff]
    %v810 = vld [vmem:[#allocation7 + $0x8] sm:$0xff]
    %v811 = vld [vmem:[#allocation7 + $0x10] sm:$0xff]
    %v812 = vld [vmem:[#allocation7 + $0x18] sm:$0xff]
    %v813 = vld [vmem:[#allocation7 + $0x20] sm:$0xff]
    %v814 = vld [vmem:[#allocation7 + $0x28] sm:$0xff]
    %v815 = vld [vmem:[#allocation7 + $0x30] sm:$0xff]
    %v816 = vld [vmem:[#allocation7 + $0x38] sm:$0xff]
    %v817 = vld [vmem:[#allocation7 + $0x40] sm:$0xff]
    %v818 = vld [vmem:[#allocation7 + $0x48] sm:$0xff]
    %v819 = vld [vmem:[#allocation7 + $0x50] sm:$0xff]
    %v820 = vld [vmem:[#allocation7 + $0x58] sm:$0xff]
    %v821 = vld [vmem:[#allocation7 + $0x60] sm:$0xff]
    %v822 = vld [vmem:[#allocation7 + $0x68] sm:$0xff]
    %v823 = vld [vmem:[#allocation7 + $0x70] sm:$0xff]
    %v824 = vld [vmem:[#allocation7 + $0x78] sm:$0xff]
    %v825 = vld [vmem:[%s5] sm:$0x1]
    %v827 = vlaneseq
    %v828 = vshrl.u32 %v827, 7
    %v829 = vsub.s32 0, %v828
    %v830 = vrot.slane %v825, %v829
    %vm848 = vcmask 1041409
    %v849 = vsel %vm848, %v724, %v718
    %vm850 = vcmask 1042434
    %v851 = vsel %vm850, %v730, %v849
    %vm852 = vcmask 1043459
    %v853 = vsel %vm852, %v736, %v851
    %vm854 = vcmask 1044484
    %v855 = vsel %vm854, %v742, %v853
    %vm856 = vcmask 1045509
    %v857 = vsel %vm856, %v748, %v855
    %vm858 = vcmask 1046534
    %v859 = vsel %vm858, %v754, %v857
    %vm860 = vcmask 1047559
    %v861 = vsel %vm860, %v760, %v859
    %v862 = vsel %vm848, %v772, %v766
    %v863 = vsel %vm850, %v778, %v862
    %v864 = vsel %vm852, %v784, %v863
    %v865 = vsel %vm854, %v790, %v864
    %v866 = vsel %vm856, %v796, %v865
    %v867 = vsel %vm858, %v802, %v866
    %v868 = vsel %vm860, %v808, %v867
    %871 = vmatprep.subr.mxu0 0.0
    %872 = vmatpush1.msra.mxu0 %v809
    %873 = vmatprep.subr.mxu0 0.0
    %874 = vmatpush1.msra.mxu0 %v810
    %875 = vmatprep.subr.mxu0 0.0
    %876 = vmatpush1.msra.mxu0 %v811
    %877 = vmatprep.subr.mxu0 0.0
    %878 = vmatpush1.msra.mxu0 %v812
    %879 = vmatprep.subr.mxu0 0.0
    %880 = vmatpush1.msra.mxu0 %v813
    %881 = vmatprep.subr.mxu0 0.0
    %882 = vmatpush1.msra.mxu0 %v814
    %883 = vmatprep.subr.mxu0 0.0
    %884 = vmatpush1.msra.mxu0 %v815
    %885 = vmatprep.subr.mxu0 0.0
    %886 = vmatpush1.msra.mxu0 %v816
    %887 = vmatprep.subr.mxu0 0.0
    %888 = vmatpush1.msra.mxu0 %v817
    %889 = vmatprep.subr.mxu0 0.0
    %890 = vmatpush1.msra.mxu0 %v818
    %891 = vmatprep.subr.mxu0 0.0
    %892 = vmatpush1.msra.mxu0 %v819
    %893 = vmatprep.subr.mxu0 0.0
    %894 = vmatpush1.msra.mxu0 %v820
    %895 = vmatprep.subr.mxu0 0.0
    %896 = vmatpush1.msra.mxu0 %v821
    %897 = vmatprep.subr.mxu0 0.0
    %898 = vmatpush1.msra.mxu0 %v822
    %899 = vmatprep.subr.mxu0 0.0
    %900 = vmatpush1.msra.mxu0 %v823
    %901 = vmatprep.subr.mxu0 0.0
    %902 = vmatpush1.msra.mxu0 %v824
    %903 = vmatprep.subr.mxu0 0.0
    %904 = vmatpush1.msra.mxu0 0.0
    %905 = vmatprep.subr.mxu0 0.0
    %906 = vmatpush1.msra.mxu0 0.0
    %907 = vmatprep.subr.mxu0 0.0
    %908 = vmatpush1.msra.mxu0 0.0
    %909 = vmatprep.subr.mxu0 0.0
    %910 = vmatpush1.msra.mxu0 0.0
    %911 = vmatprep.subr.mxu0 0.0
    %912 = vmatpush1.msra.mxu0 0.0
    %913 = vmatprep.subr.mxu0 0.0
    %914 = vmatpush1.msra.mxu0 0.0
    %915 = vmatprep.subr.mxu0 0.0
    %916 = vmatpush1.msra.mxu0 0.0
    %917 = vmatprep.subr.mxu0 0.0
    %918 = vmatpush1.msra.mxu0 0.0
    %919 = vmatprep.subr.mxu0 0.0
    %920 = vmatpush1.msra.mxu0 0.0
    %921 = vmatprep.subr.mxu0 0.0
    %922 = vmatpush1.msra.mxu0 0.0
    %923 = vmatprep.subr.mxu0 0.0
    %924 = vmatpush1.msra.mxu0 0.0
    %925 = vmatprep.subr.mxu0 0.0
    %926 = vmatpush1.msra.mxu0 0.0
    %927 = vmatprep.subr.mxu0 0.0
    %928 = vmatpush1.msra.mxu0 0.0
    %929 = vmatprep.subr.mxu0 0.0
    %930 = vmatpush1.msra.mxu0 0.0
    %931 = vmatprep.subr.mxu0 0.0
    %932 = vmatpush1.msra.mxu0 0.0
    %933 = vmatprep.subr.mxu0 0.0
    %934 = vmatpush1.msra.mxu0 0.0
    %935 = vmatprep.mubr.f32.mxu0 0.0
    %936 = vmatmul.mubr.f32.gmra.mrb[0].mxu0 %v861
    %v937 = vpop.f32.mrb[0].mxu0
    %v938 = vadd.f32 %v830, %v937
    %v939 = vpop.f32.mrb[0].mxu0
    %940 = vmatprep.mubr.f32.mxu0 0.0
    %941 = vmatmul.mubr.f32.gmra.mrb[0].mxu0 %v868
    %v942 = vpop.f32.mrb[0].mxu0
    %v943 = vadd.f32 %v830, %v942
    %v944 = vpop.f32.mrb[0].mxu0
    %945 = vdwg.mxu0
    %v946 = vtanh.pop %v938
    %v947 = vtanh.pop %v943
    %v948 = vld [vmem:[%s6] sm:$0x1]
    %v950 = vlaneseq
    %v951 = vshrl.u32 %v950, 7
    %v952 = vsub.s32 0, %v951
    %v953 = vrot.slane %v948, %v952
    %v955 = vmul.f32 %v946, %v953
    %v956 = vmul.f32 %v947, %v953
    %957 = vadd.xlane.f32.xlu0 %v955
    %v958 = vpop.xlane.xlu0 %957
    %959 = vadd.xlane.f32.xlu0 %v956
    %v960 = vpop.xlane.xlu0 %959
    %v961 = vtanh.pop %v958
    %v962 = vtanh.pop %v960
    %vm963 = vcmp.lt.s32.totalorder %v405, 4
    %v964 = vsel %vm963, 1, 0
    %vm965 = vcmp.eq.s32.totalorder %v964, 1
    %v966 = vsel %vm965, %v961, -1e+30
    %v967 = vsel %vm965, %v962, -1e+30
    %v968 = vrot.slane %v966, 4
    %v969 = vmax.f32 %v966, %v968
    %v970 = vrot.slane %v969, 2
    %v971 = vmax.f32 %v969, %v970
    %v972 = vrot.slane %v971, 1
    %v973 = vmax.f32 %v971, %v972
    %v974 = vrot.slane %v967, 4
    %v975 = vmax.f32 %v967, %v974
    %v976 = vrot.slane %v975, 2
    %v977 = vmax.f32 %v975, %v976
    %v978 = vrot.slane %v977, 1
    %v979 = vmax.f32 %v977, %v978
    %v980 = vsub.f32 %v966, %v973
    %v981 = vsub.f32 %v967, %v979
    %v982 = vmul.f32 %v980, 1.442695
    %v983 = vpow.pop %v982
    %v984 = vmul.f32 %v981, 1.442695
    %v985 = vpow.pop %v984
    %v986 = vrot.slane %v983, 4
    %v987 = vadd.f32 %v983, %v986
    %v988 = vrot.slane %v987, 2
    %v989 = vadd.f32 %v987, %v988
    %v990 = vrot.slane %v989, 1
    %v991 = vadd.f32 %v989, %v990
    %v992 = vrot.slane %v985, 4
    %v993 = vadd.f32 %v985, %v992
    %v994 = vrot.slane %v993, 2
    %v995 = vadd.f32 %v993, %v994
    %v996 = vrot.slane %v995, 1
    %v997 = vadd.f32 %v995, %v996
    %v998 = vrcp.pop %v991
    %v999 = vrcp.pop %v997
    %v1000 = vmul.f32 %v983, %v998
    %v1001 = vmul.f32 %v985, %v999
    %v1004 = vrot.slane %v1000, 1
    %v1005 = vrot.slane %v1000, 2
    %v1006 = vrot.slane %v1000, 3
    %v1007 = vrot.slane %v1000, 4
    %v1008 = vrot.slane %v1000, 5
    %v1009 = vrot.slane %v1000, 6
    %v1010 = vrot.slane %v1000, 7
    %v1011 = vrot.slane %v1001, 1
    %v1012 = vrot.slane %v1001, 2
    %v1013 = vrot.slane %v1001, 3
    %v1014 = vrot.slane %v1001, 4
    %v1015 = vrot.slane %v1001, 5
    %v1016 = vrot.slane %v1001, 6
    %v1017 = vrot.slane %v1001, 7
    %v1034 = vmul.f32 %v718, %v1000
    %v1035 = vmul.f32 %v724, %v1004
    %v1036 = vmul.f32 %v730, %v1005
    %v1037 = vmul.f32 %v736, %v1006
    %v1038 = vmul.f32 %v742, %v1007
    %v1039 = vmul.f32 %v748, %v1008
    %v1040 = vmul.f32 %v754, %v1009
    %v1041 = vmul.f32 %v760, %v1010
    %v1042 = vmul.f32 %v766, %v1001
    %v1043 = vmul.f32 %v772, %v1011
    %v1044 = vmul.f32 %v778, %v1012
    %v1045 = vmul.f32 %v784, %v1013
    %v1046 = vmul.f32 %v790, %v1014
    %v1047 = vmul.f32 %v796, %v1015
    %v1048 = vmul.f32 %v802, %v1016
    %v1049 = vmul.f32 %v808, %v1017
    %v1066 = vrot.slane %v1035, 7
    %v1067 = vsel %vm848, %v1066, %v1034
    %v1068 = vrot.slane %v1036, 6
    %v1069 = vsel %vm850, %v1068, %v1067
    %v1070 = vrot.slane %v1037, 5
    %v1071 = vsel %vm852, %v1070, %v1069
    %v1072 = vrot.slane %v1038, 4
    %v1073 = vsel %vm854, %v1072, %v1071
    %v1074 = vrot.slane %v1039, 3
    %v1075 = vsel %vm856, %v1074, %v1073
    %v1076 = vrot.slane %v1040, 2
    %v1077 = vsel %vm858, %v1076, %v1075
    %v1078 = vrot.slane %v1041, 1
    %v1079 = vsel %vm860, %v1078, %v1077
    %v1080 = vrot.slane %v1043, 7
    %v1081 = vsel %vm848, %v1080, %v1042
    %v1082 = vrot.slane %v1044, 6
    %v1083 = vsel %vm850, %v1082, %v1081
    %v1084 = vrot.slane %v1045, 5
    %v1085 = vsel %vm852, %v1084, %v1083
    %v1086 = vrot.slane %v1046, 4
    %v1087 = vsel %vm854, %v1086, %v1085
    %v1088 = vrot.slane %v1047, 3
    %v1089 = vsel %vm856, %v1088, %v1087
    %v1090 = vrot.slane %v1048, 2
    %v1091 = vsel %vm858, %v1090, %v1089
    %v1092 = vrot.slane %v1049, 1
    %v1093 = vsel %vm860, %v1092, %v1091
    %v1096 = vrot.slane %v1079, 4
    %v1097 = vadd.f32 %v1079, %v1096
    %v1098 = vrot.slane %v1097, 2
    %v1099 = vadd.f32 %v1097, %v1098
    %v1100 = vrot.slane %v1099, 1
    %v1101 = vadd.f32 %v1099, %v1100
    %v1102 = vrot.slane %v1093, 4
    %v1103 = vadd.f32 %v1093, %v1102
    %v1104 = vrot.slane %v1103, 2
    %v1105 = vadd.f32 %v1103, %v1104
    %v1106 = vrot.slane %v1105, 1
    %v1107 = vadd.f32 %v1105, %v1106
    %v1110 = vrot.slane %v1107, 7
    %v1111 = vsel %vm848, %v1110, %v1101
    %1113 = vst [vmem:[#allocation8] sm:$0x3] %v1111
    // Predicated region
    $region42: #{tpu_custom_call.1} parent=1 // pred_check
      _
    $region43: #{tpu_custom_call.1} parent=1 // pred_check_branch
      %1115 = sbr.rel (0) target = $region45
    $region44: #{tpu_custom_call.1} parent=1 // pred_region
      %s1117 = ssub.s32 32, 32
      %1118 = vsyncadd [#allocation4], %s1117
      %s1120 = sshll.u32 [#allocation8], 4
      %s1121 = int_to_ptr.vmem [resolvable:$true] %s1120
      %1123 = dma.vmem_to_hbm [thread:$0]  %s1121, 32, %s7, [#allocation4]
    $region45: #{tpu_custom_call.1} parent=1 // pred_fallthru
      _
    // Predicated region
    $region46: #{tpu_custom_call.1} parent=1 // pred_check
      _
    $region47: #{tpu_custom_call.1} parent=1 // pred_check_branch
      %1125 = sbr.rel (0) target = $region49
    $region48: #{tpu_custom_call.1} parent=1 // pred_region
      %1126 = dma.done [#allocation4], 32
    $region49: #{tpu_custom_call.1} parent=1 // pred_fallthru
      _
    %1127 = vsyncpa [#allocation3], 1
    %1128 = vsyncpa [#allocation6], 1
    %1129 = vsyncpa [#allocation4], 1

</llo_original>
